<compile_context>
chip_gen: v6e
topology: v6e:2x2x1
jax: 0.10.0
libtpu: 0.0.40
codegen_flags: <defaults>
</compile_context>

<pallas_src>
import jax
import jax.numpy as jnp
import numpy as np
from jax import lax
from jax.experimental import pallas as pl
from jax.experimental.pallas import tpu as pltpu

EPS = 1e-5
KH = KW = 3  # kernel_size=3, stride=1, padding=1 for this ConvBlock instance


def convblock_kernel(x_ref, wcat_ref, mfold_ref, g_ref, b_ref, tmask_ref,
                     bmask_ref, o_ref, x2d_ref):
    """Conv2d(3x3,s1,p1) + BatchNorm2d (batch stats) + ReLU, MXU-centric.

    x_ref:     (N, Cin, H, W)        raw NCHW input
    wcat_ref:  (Cin*W, KH*W*Cout)    banded im2col weights (band zeros = w-pad)
    mfold_ref: (W*Cout, W*Cout)      per-channel fold/broadcast, 1/count baked in
    g_ref:     (1, W*Cout)           gamma tiled over w
    b_ref:     (1, W*Cout)           beta  tiled over w
    tmask_ref: (N*H, 1)              0.0 where h == 0   else 1.0 (top h-halo)
    bmask_ref: (N*H, 1)              0.0 where h == H-1 else 1.0 (bottom h-halo)
    o_ref:     (N*H, W*Cout)         lane-dense output slab
    x2d_ref:   (N*H, Cin*W)          VMEM scratch: (n,h)-major matmul LHS
    """
    N, Cin, H, W = x_ref.shape
    NH, WC = o_ref.shape

    # ---- 1) NCHW -> (N*H, Cin*W) LHS: Cin small stripe writes, built once ---
    xv = x_ref[...]
    for ci in range(Cin):
        x2d_ref[:, ci * W:(ci + 1) * W] = xv[:, ci, :, :].reshape(NH, W)

    # ---- 2) conv as ONE MXU matmul against the banded weight matrix ---------
    # Band zeros provide the w-padding; h-padding = two sublane rolls + masks.
    # Conv bias intentionally omitted: cancelled by BN mean subtraction.
    p = jnp.dot(x2d_ref[...], wcat_ref[...],
                preferred_element_type=jnp.float32)            # (NH, KH*WC)
    acc = (p[:, WC:2 * WC]
           + tmask_ref[...] * pltpu.roll(p[:, 0:WC], 1, axis=0)
           + bmask_ref[...] * pltpu.roll(p[:, 2 * WC:3 * WC], NH - 1, axis=0))

    # ---- 3) BatchNorm2d batch stats on the MXU ------------------------------
    # Row-sum as a matmul (frees the XLU), chained into the channel-fold
    # matmul; two-pass variance for numerical robustness.
    ones_row = jnp.ones((1, NH), jnp.float32)
    mean = jnp.dot(jnp.dot(ones_row, acc, preferred_element_type=jnp.float32),
                   mfold_ref[...], preferred_element_type=jnp.float32)  # (1, WC)
    d = acc - mean
    var = jnp.dot(jnp.dot(ones_row, d * d, preferred_element_type=jnp.float32),
                  mfold_ref[...], preferred_element_type=jnp.float32)   # (1, WC)
    inv_std = lax.rsqrt(var + EPS)

    # ---- 4) affine + ReLU, full unmasked lane-dense store -------------------
    o_ref[...] = jnp.maximum(d * (inv_std * g_ref[...]) + b_ref[...], 0.0)


@jax.jit
def conv_block(x_nchw, w_oihw, gamma, beta):
    """x_nchw: (N, Cin, H, W); w_oihw: (Cout, Cin, 3, 3) (PyTorch layout).

    Returns (N, Cout, H, W), matching ConvBlock.forward (conv bias omitted:
    it is mathematically cancelled by training-mode BatchNorm).
    """
    # TODO(synk): BatchNorm2d's running_mean/running_var momentum update is a
    # stateful training side-effect and is not materialized here.
    N, Cin, H, W = x_nchw.shape
    Cout = w_oihw.shape[0]
    WC = W * Cout
    NH = N * H
    count = float(N * H * W)

    # --- parameter-side preprocessing (tiny, weight/constant only) -----------
    # Banded im2col weight: wcat[ci*W + w_in, kh*WC + w_out*Cout + co]
    #   = w[co, ci, kh, w_in - w_out + 1], zero outside the band (w-padding).
    wi = jnp.arange(W)[:, None, None]
    kk = jnp.arange(KW)[None, :, None]
    wo = jnp.arange(W)[None, None, :]
    band = (wi == wo + kk - 1).astype(jnp.float32)             # (W, KW, W)
    wcat = jnp.einsum("ikq,ocjk->cijqo", band,
                      w_oihw.astype(jnp.float32))              # (Cin,W,KH,W,Cout)
    wcat = wcat.reshape(Cin * W, KH * WC)

    # Channel fold/broadcast matrix (compile-time constant), 1/count baked in.
    ch = jnp.arange(WC) % Cout
    mfold = (ch[:, None] == ch[None, :]).astype(jnp.float32) / count

    gtile = jnp.tile(gamma.astype(jnp.float32), (W,)).reshape(1, WC)
    btile = jnp.tile(beta.astype(jnp.float32), (W,)).reshape(1, WC)

    # h-halo row masks (compile-time constants).
    h_of_row = jnp.arange(NH) % H
    tmask = (h_of_row != 0).astype(jnp.float32).reshape(NH, 1)
    bmask = (h_of_row != H - 1).astype(jnp.float32).reshape(NH, 1)

    out_slab = pl.pallas_call(
        convblock_kernel,
        out_shape=jax.ShapeDtypeStruct((NH, WC), jnp.float32),
        in_specs=[pl.BlockSpec(memory_space=pltpu.VMEM)] * 7,
        out_specs=pl.BlockSpec(memory_space=pltpu.VMEM),
        scratch_shapes=[pltpu.VMEM((NH, Cin * W), jnp.float32)],
    )(x_nchw, wcat, mfold, gtile, btile, tmask, bmask)

    # lane-dense slab [n*H+h, w*Cout+co] -> (N, Cout, H, W) (NCHW contract).
    return jnp.transpose(out_slab.reshape(N, H, W, Cout), (0, 3, 1, 2))


def reference(x_nchw, w_oihw, b, gamma, beta, padding=1):
    """Pure-JAX reference (lax conv + conv bias + training-mode BN + ReLU)."""
    y = lax.conv_general_dilated(
        x_nchw, w_oihw, window_strides=(1, 1),
        padding=[(padding, padding), (padding, padding)],
        dimension_numbers=("NCHW", "OIHW", "NCHW"))
    y = y + b.reshape(1, -1, 1, 1)
    mean = jnp.mean(y, axis=(0, 2, 3), keepdims=True)
    var = jnp.mean((y - mean) ** 2, axis=(0, 2, 3), keepdims=True)
    y = (y - mean) * lax.rsqrt(var + EPS)
    y = y * gamma.reshape(1, -1, 1, 1) + beta.reshape(1, -1, 1, 1)
    return jnp.maximum(y, 0.0)


if __name__ == "__main__":
    N, Cin, H, W = 2, 4, 16, 16
    Cout = 8

    key = jax.random.PRNGKey(0)
    kx, kw, kb, kg, kbe = jax.random.split(key, 5)

    x = jax.random.normal(kx, (N, Cin, H, W), dtype=jnp.float32)
    fan_in = Cin * KH * KW
    bound = 1.0 / np.sqrt(fan_in)
    w = jax.random.uniform(kw, (Cout, Cin, KH, KW), jnp.float32, -bound, bound)
    # Conv bias exists in the module but is exactly cancelled by training-mode
    # BN mean subtraction -> only used by the reference to prove equivalence.
    b = jax.random.uniform(kb, (Cout,), jnp.float32, -bound, bound)
    gamma = 1.0 + 0.1 * jax.random.normal(kg, (Cout,), dtype=jnp.float32)
    beta = 0.1 * jax.random.normal(kbe, (Cout,), dtype=jnp.float32)

    out = jax.block_until_ready(conv_block(x, w, gamma, beta))
    ref = jax.block_until_ready(reference(x, w, b, gamma, beta, padding=1))

    np.testing.assert_allclose(np.asarray(out), np.asarray(ref),
                               rtol=1e-3, atol=1e-3)
    print("KERNEL_OK")
</pallas_src>

<mosaic_0001>
module attributes {stable_mosaic.version = 11 : i64} {
  func.func @convblock_kernel(%arg0: memref<2x4x16x16xf32, #tpu.memory_space<vmem>>, %arg1: memref<64x384xf32, #tpu.memory_space<vmem>>, %arg2: memref<128x128xf32, #tpu.memory_space<vmem>>, %arg3: memref<1x128xf32, #tpu.memory_space<vmem>>, %arg4: memref<1x128xf32, #tpu.memory_space<vmem>>, %arg5: memref<32x1xf32, #tpu.memory_space<vmem>>, %arg6: memref<32x1xf32, #tpu.memory_space<vmem>>, %arg7: memref<32x128xf32, #tpu.memory_space<vmem>>, %arg8: memref<32x64xf32, #tpu.memory_space<vmem>>) attributes {dimension_semantics = [], scalar_prefetch = 0 : i64, scratch_operands = 1 : i64, tpu.core_type = #tpu.core_type<tc>} {
    %c0 = arith.constant 0 : index
    %c0_0 = arith.constant 0 : index
    %c0_1 = arith.constant 0 : index
    %c0_2 = arith.constant 0 : index
    %0 = vector.load %arg0[%c0, %c0_0, %c0_1, %c0_2] : memref<2x4x16x16xf32, #tpu.memory_space<vmem>>, vector<2x4x16x16xf32>
    %1 = vector.extract_strided_slice %0 {offsets = [0, 0, 0, 0], sizes = [2, 1, 16, 16], strides = [1, 1, 1, 1]} : vector<2x4x16x16xf32> to vector<2x1x16x16xf32>
    %2 = vector.shape_cast %1 : vector<2x1x16x16xf32> to vector<2x16x16xf32>
    %3 = vector.shape_cast %2 : vector<2x16x16xf32> to vector<32x16xf32>
    %c0_3 = arith.constant 0 : index
    %c0_4 = arith.constant 0 : index
    %4 = vector.load %arg8[%c0_3, %c0_4] : memref<32x64xf32, #tpu.memory_space<vmem>>, vector<32x16xf32>
    tpu.vector_store %arg8[%c0_3, %c0_4], %3 {strides = array<i32>} : memref<32x64xf32, #tpu.memory_space<vmem>>, vector<32x16xf32>,
    %5 = vector.extract_strided_slice %0 {offsets = [0, 1, 0, 0], sizes = [2, 1, 16, 16], strides = [1, 1, 1, 1]} : vector<2x4x16x16xf32> to vector<2x1x16x16xf32>
    %6 = vector.shape_cast %5 : vector<2x1x16x16xf32> to vector<2x16x16xf32>
    %7 = vector.shape_cast %6 : vector<2x16x16xf32> to vector<32x16xf32>
    %c0_5 = arith.constant 0 : index
    %c16 = arith.constant 16 : index
    %8 = vector.load %arg8[%c0_5, %c16] : memref<32x64xf32, #tpu.memory_space<vmem>>, vector<32x16xf32>
    tpu.vector_store %arg8[%c0_5, %c16], %7 {strides = array<i32>} : memref<32x64xf32, #tpu.memory_space<vmem>>, vector<32x16xf32>,
    %9 = vector.extract_strided_slice %0 {offsets = [0, 2, 0, 0], sizes = [2, 1, 16, 16], strides = [1, 1, 1, 1]} : vector<2x4x16x16xf32> to vector<2x1x16x16xf32>
    %10 = vector.shape_cast %9 : vector<2x1x16x16xf32> to vector<2x16x16xf32>
    %11 = vector.shape_cast %10 : vector<2x16x16xf32> to vector<32x16xf32>
    %c0_6 = arith.constant 0 : index
    %c32 = arith.constant 32 : index
    %12 = vector.load %arg8[%c0_6, %c32] : memref<32x64xf32, #tpu.memory_space<vmem>>, vector<32x16xf32>
    tpu.vector_store %arg8[%c0_6, %c32], %11 {strides = array<i32>} : memref<32x64xf32, #tpu.memory_space<vmem>>, vector<32x16xf32>,
    %13 = vector.extract_strided_slice %0 {offsets = [0, 3, 0, 0], sizes = [2, 1, 16, 16], strides = [1, 1, 1, 1]} : vector<2x4x16x16xf32> to vector<2x1x16x16xf32>
    %14 = vector.shape_cast %13 : vector<2x1x16x16xf32> to vector<2x16x16xf32>
    %15 = vector.shape_cast %14 : vector<2x16x16xf32> to vector<32x16xf32>
    %c0_7 = arith.constant 0 : index
    %c48 = arith.constant 48 : index
    %16 = vector.load %arg8[%c0_7, %c48] : memref<32x64xf32, #tpu.memory_space<vmem>>, vector<32x16xf32>
    tpu.vector_store %arg8[%c0_7, %c48], %15 {strides = array<i32>} : memref<32x64xf32, #tpu.memory_space<vmem>>, vector<32x16xf32>,
    %c0_8 = arith.constant 0 : index
    %c0_9 = arith.constant 0 : index
    %17 = vector.load %arg8[%c0_8, %c0_9] : memref<32x64xf32, #tpu.memory_space<vmem>>, vector<32x64xf32>
    %c0_10 = arith.constant 0 : index
    %c0_11 = arith.constant 0 : index
    %18 = vector.load %arg1[%c0_10, %c0_11] : memref<64x384xf32, #tpu.memory_space<vmem>>, vector<64x384xf32>
    %cst = arith.constant dense<0.000000e+00> : vector<32x384xf32>
    %19 = tpu.matmul %17, %18, %cst {dimension_numbers = #tpu.dot_dimension_numbers<[1], [0], [0], [1], [0, 0, 1, 1], [], []>} : vector<32x64xf32>, vector<64x384xf32>, vector<32x384xf32> -> vector<32x384xf32>
    %20 = vector.extract_strided_slice %19 {offsets = [0, 128], sizes = [32, 128], strides = [1, 1]} : vector<32x384xf32> to vector<32x128xf32>
    %c0_12 = arith.constant 0 : index
    %c0_13 = arith.constant 0 : index
    %21 = vector.load %arg5[%c0_12, %c0_13] : memref<32x1xf32, #tpu.memory_space<vmem>>, vector<32x1xf32>
    %22 = vector.extract_strided_slice %19 {offsets = [0, 0], sizes = [32, 128], strides = [1, 1]} : vector<32x384xf32> to vector<32x128xf32>
    %c1_i32 = arith.constant 1 : i32
    %23 = tpu.dynamic_rotate %22 by %c1_i32 dim 0 : vector<32x128xf32>, i32 -> vector<32x128xf32>
    %24 = vector.broadcast %21 : vector<32x1xf32> to vector<32x128xf32>
    %25 = arith.mulf %24, %23 : vector<32x128xf32>
    %26 = arith.addf %20, %25 : vector<32x128xf32>
    %c0_14 = arith.constant 0 : index
    %c0_15 = arith.constant 0 : index
    %27 = vector.load %arg6[%c0_14, %c0_15] : memref<32x1xf32, #tpu.memory_space<vmem>>, vector<32x1xf32>
    %28 = vector.extract_strided_slice %19 {offsets = [0, 256], sizes = [32, 128], strides = [1, 1]} : vector<32x384xf32> to vector<32x128xf32>
    %c31_i32 = arith.constant 31 : i32
    %29 = tpu.dynamic_rotate %28 by %c31_i32 dim 0 : vector<32x128xf32>, i32 -> vector<32x128xf32>
    %30 = vector.broadcast %27 : vector<32x1xf32> to vector<32x128xf32>
    %31 = arith.mulf %30, %29 : vector<32x128xf32>
    %32 = arith.addf %26, %31 : vector<32x128xf32>
    %cst_16 = arith.constant 1.000000e+00 : f32
    %33 = vector.broadcast %cst_16 : f32 to vector<1x32xf32>
    %cst_17 = arith.constant dense<0.000000e+00> : vector<1x128xf32>
    %34 = tpu.matmul %33, %32, %cst_17 {dimension_numbers = #tpu.dot_dimension_numbers<[1], [0], [0], [1], [0, 0, 1, 1], [], []>} : vector<1x32xf32>, vector<32x128xf32>, vector<1x128xf32> -> vector<1x128xf32>
    %c0_18 = arith.constant 0 : index
    %c0_19 = arith.constant 0 : index
    %35 = vector.load %arg2[%c0_18, %c0_19] : memref<128x128xf32, #tpu.memory_space<vmem>>, vector<128x128xf32>
    %cst_20 = arith.constant dense<0.000000e+00> : vector<1x128xf32>
    %36 = tpu.matmul %34, %35, %cst_20 {dimension_numbers = #tpu.dot_dimension_numbers<[1], [0], [0], [1], [0, 0, 1, 1], [], []>} : vector<1x128xf32>, vector<128x128xf32>, vector<1x128xf32> -> vector<1x128xf32>
    %37 = vector.broadcast %36 : vector<1x128xf32> to vector<32x128xf32>
    %38 = arith.subf %32, %37 : vector<32x128xf32>
    %39 = arith.mulf %38, %38 : vector<32x128xf32>
    %cst_21 = arith.constant dense<0.000000e+00> : vector<1x128xf32>
    %40 = tpu.matmul %33, %39, %cst_21 {dimension_numbers = #tpu.dot_dimension_numbers<[1], [0], [0], [1], [0, 0, 1, 1], [], []>} : vector<1x32xf32>, vector<32x128xf32>, vector<1x128xf32> -> vector<1x128xf32>
    %c0_22 = arith.constant 0 : index
    %c0_23 = arith.constant 0 : index
    %41 = vector.load %arg2[%c0_22, %c0_23] : memref<128x128xf32, #tpu.memory_space<vmem>>, vector<128x128xf32>
    %cst_24 = arith.constant dense<0.000000e+00> : vector<1x128xf32>
    %42 = tpu.matmul %40, %41, %cst_24 {dimension_numbers = #tpu.dot_dimension_numbers<[1], [0], [0], [1], [0, 0, 1, 1], [], []>} : vector<1x128xf32>, vector<128x128xf32>, vector<1x128xf32> -> vector<1x128xf32>
    %cst_25 = arith.constant 9.99999974E-6 : f32
    %43 = vector.broadcast %cst_25 : f32 to vector<1x128xf32>
    %44 = arith.addf %42, %43 : vector<1x128xf32>
    %45 = math.rsqrt %44 : vector<1x128xf32>
    %c0_26 = arith.constant 0 : index
    %c0_27 = arith.constant 0 : index
    %46 = vector.load %arg3[%c0_26, %c0_27] : memref<1x128xf32, #tpu.memory_space<vmem>>, vector<1x128xf32>
    %47 = arith.mulf %45, %46 : vector<1x128xf32>
    %48 = vector.broadcast %47 : vector<1x128xf32> to vector<32x128xf32>
    %49 = arith.mulf %38, %48 : vector<32x128xf32>
    %c0_28 = arith.constant 0 : index
    %c0_29 = arith.constant 0 : index
    %50 = vector.load %arg4[%c0_28, %c0_29] : memref<1x128xf32, #tpu.memory_space<vmem>>, vector<1x128xf32>
    %51 = vector.broadcast %50 : vector<1x128xf32> to vector<32x128xf32>
    %52 = arith.addf %49, %51 : vector<32x128xf32>
    %cst_30 = arith.constant 0.000000e+00 : f32
    %53 = vector.broadcast %cst_30 : f32 to vector<32x128xf32>
    %54 = arith.maximumf %52, %53 : vector<32x128xf32>
    %c0_31 = arith.constant 0 : index
    %c0_32 = arith.constant 0 : index
    %55 = vector.load %arg7[%c0_31, %c0_32] : memref<32x128xf32, #tpu.memory_space<vmem>>, vector<32x128xf32>
    tpu.vector_store %arg7[%c0_31, %c0_32], %54 {strides = array<i32>} : memref<32x128xf32, #tpu.memory_space<vmem>>, vector<32x128xf32>,
    return
  }
}

</mosaic_0001>

<llo_original>
// kernel: tile.13
$region0: #{tile.13}
  #allocation0 [shape = 's32[1]{0}', space=sflag, size = 0x4, scoped, tag = 'scoped memory for tile.13']
  %s0 = inlined_call_operand.vmem [shape: f32[8], index: 0, kind: input, shape index: {}]
  %s1 = inlined_call_operand.vmem [shape: f32[16,8], index: 1, kind: output, shape index: {}]
  // Predicated region
  $region2: #{tile.13} parent=0 // pred_check
    _
  $region3: #{tile.13} parent=0 // pred_check_branch
    %3 = sbr.rel (0) target = $region5
  $region4: #{tile.13} parent=0 // pred_region
    _
  $region5: #{tile.13} parent=0 // pred_fallthru
    _
  %v4 = vld [vmem:[%s0] ss:$0 sm:$0xff]
  %5 = vst [vmem:[%s1] sm:$0xff] %v4
  %s6 = scalar_lea.vmem %s1, 8
  %7 = vst [vmem:[%s6] sm:$0xff] %v4

// kernel: tile.14
$region0: #{tile.14}
  %s0 = inlined_call_operand.vmem [shape: f32[16,8], index: 0, kind: input, shape index: {}]
  %s1 = inlined_call_operand.vmem [shape: f32[1,128], index: 1, kind: output, shape index: {}]
  $region1: #{tile.14} parent=0
    #allocation0 [shape = 'u8[4096]{0}', space=vmem, size = 0x1000, scoped, tag = 'scoped mem for output reshape']
    %v2 = vld [vmem:[%s0] sm:$0x1]
    %vm3 = vcmask 64512
    %4 = vst.msk [vmem:[#allocation0] sm:$0x1] %vm3, %v2
    %s5 = scalar_lea.vmem %s0, 15
    %v6 = vld [vmem:[%s5] sm:$0x1]
    %7 = vrot.lane.b32.xlu0 %v6, 120
    %v8 = vpop.permute.xlu0 %7
    %vm9 = vcmask 1048512
    %10 = vst.msk [vmem:[#allocation0] sm:$0x1] %vm9, %v8
    %s11 = scalar_lea.vmem %s0, 14
    %v12 = vld [vmem:[%s11] sm:$0x1]
    %13 = vrot.lane.b32.xlu0 %v12, 112
    %v14 = vpop.permute.xlu0 %13
    %vm15 = vcmask 982912
    %16 = vst.msk [vmem:[#allocation0] sm:$0x1] %vm15, %v14
    %s17 = scalar_lea.vmem %s0, 13
    %v18 = vld [vmem:[%s17] sm:$0x1]
    %19 = vrot.lane.b32.xlu0 %v18, 104
    %v20 = vpop.permute.xlu0 %19
    %vm21 = vcmask 917312
    %22 = vst.msk [vmem:[#allocation0] sm:$0x1] %vm21, %v20
    %s23 = scalar_lea.vmem %s0, 12
    %v24 = vld [vmem:[%s23] sm:$0x1]
    %25 = vrot.lane.b32.xlu0 %v24, 96
    %v26 = vpop.permute.xlu0 %25
    %vm27 = vcmask 851712
    %28 = vst.msk [vmem:[#allocation0] sm:$0x1] %vm27, %v26
    %s29 = scalar_lea.vmem %s0, 11
    %v30 = vld [vmem:[%s29] sm:$0x1]
    %31 = vrot.lane.b32.xlu0 %v30, 88
    %v32 = vpop.permute.xlu0 %31
    %vm33 = vcmask 786112
    %34 = vst.msk [vmem:[#allocation0] sm:$0x1] %vm33, %v32
    %s35 = scalar_lea.vmem %s0, 10
    %v36 = vld [vmem:[%s35] sm:$0x1]
    %37 = vrot.lane.b32.xlu0 %v36, 80
    %v38 = vpop.permute.xlu0 %37
    %vm39 = vcmask 720512
    %40 = vst.msk [vmem:[#allocation0] sm:$0x1] %vm39, %v38
    %s41 = scalar_lea.vmem %s0, 9
    %v42 = vld [vmem:[%s41] sm:$0x1]
    %43 = vrot.lane.b32.xlu0 %v42, 72
    %v44 = vpop.permute.xlu0 %43
    %vm45 = vcmask 654912
    %46 = vst.msk [vmem:[#allocation0] sm:$0x1] %vm45, %v44
    %s47 = scalar_lea.vmem %s0, 8
    %v48 = vld [vmem:[%s47] sm:$0x1]
    %49 = vrot.lane.b32.xlu0 %v48, 64
    %v50 = vpop.permute.xlu0 %49
    %vm51 = vcmask 589312
    %52 = vst.msk [vmem:[#allocation0] sm:$0x1] %vm51, %v50
    %s53 = scalar_lea.vmem %s0, 7
    %v54 = vld [vmem:[%s53] sm:$0x1]
    %55 = vrot.lane.b32.xlu0 %v54, 56
    %v56 = vpop.permute.xlu0 %55
    %vm57 = vcmask 523712
    %58 = vst.msk [vmem:[#allocation0] sm:$0x1] %vm57, %v56
    %s59 = scalar_lea.vmem %s0, 6
    %v60 = vld [vmem:[%s59] sm:$0x1]
    %61 = vrot.lane.b32.xlu0 %v60, 48
    %v62 = vpop.permute.xlu0 %61
    %vm63 = vcmask 458112
    %64 = vst.msk [vmem:[#allocation0] sm:$0x1] %vm63, %v62
    %s65 = scalar_lea.vmem %s0, 5
    %v66 = vld [vmem:[%s65] sm:$0x1]
    %67 = vrot.lane.b32.xlu0 %v66, 40
    %v68 = vpop.permute.xlu0 %67
    %vm69 = vcmask 392512
    %70 = vst.msk [vmem:[#allocation0] sm:$0x1] %vm69, %v68
    %s71 = scalar_lea.vmem %s0, 4
    %v72 = vld [vmem:[%s71] sm:$0x1]
    %73 = vrot.lane.b32.xlu0 %v72, 32
    %v74 = vpop.permute.xlu0 %73
    %vm75 = vcmask 326912
    %76 = vst.msk [vmem:[#allocation0] sm:$0x1] %vm75, %v74
    %s77 = scalar_lea.vmem %s0, 3
    %v78 = vld [vmem:[%s77] sm:$0x1]
    %79 = vrot.lane.b32.xlu0 %v78, 24
    %v80 = vpop.permute.xlu0 %79
    %vm81 = vcmask 261312
    %82 = vst.msk [vmem:[#allocation0] sm:$0x1] %vm81, %v80
    %s83 = scalar_lea.vmem %s0, 2
    %v84 = vld [vmem:[%s83] sm:$0x1]
    %85 = vrot.lane.b32.xlu0 %v84, 16
    %v86 = vpop.permute.xlu0 %85
    %vm87 = vcmask 195712
    %88 = vst.msk [vmem:[#allocation0] sm:$0x1] %vm87, %v86
    %s89 = scalar_lea.vmem %s0, 1
    %v90 = vld [vmem:[%s89] sm:$0x1]
    %91 = vrot.lane.b32.xlu0 %v90, 8
    %v92 = vpop.permute.xlu0 %91
    %vm93 = vcmask 130112
    %94 = vst.msk [vmem:[#allocation0] sm:$0x1] %vm93, %v92
    %s96 = sshll.u32 1, 1
    %s97 = ssub.s32 %s96, 1
    %v99 = vld [vmem:[#allocation0] sm:%s97]
    %s100 = sshll.u32 1, 1
    %s101 = ssub.s32 %s100, 1
    %102 = vst [vmem:[%s1] sm:%s101] %v99

// kernel: conv_block.1
$region0: #{conv_block.1}
  #allocation0 [shape = 'u32[]', space=smem, size = 0x4, offset = 0x4, fixed_abs, tag = 'smem constant byte address 0x4 - core index']
  #allocation1 [shape = 'u32[144,128]{1,0:T(1,128)}', space=vmem, size = 0x12000, scoped, tag = 'internal scratch']
  #allocation2 [shape = 'f32[32,64]{1,0:T(8,128)}', space=vmem, size = 0x4000, scoped, tag = 'scratch operand']
  %s0 = inlined_call_operand.vmem [shape: f32[2,4,16,16], index: 0, kind: input, shape index: {}]
  %s1 = inlined_call_operand.vmem [shape: f32[64,384], index: 1, kind: input, shape index: {}]
  %s2 = inlined_call_operand.vmem [shape: f32[128,128], index: 2, kind: input, shape index: {}]
  %s3 = inlined_call_operand.vmem [shape: f32[1,128], index: 3, kind: input, shape index: {}]
  %s4 = inlined_call_operand.vmem [shape: f32[1,128], index: 4, kind: input, shape index: {}]
  %s5 = inlined_call_operand.vmem [shape: f32[32,1], index: 5, kind: input, shape index: {}]
  %s6 = inlined_call_operand.vmem [shape: f32[32,1], index: 6, kind: input, shape index: {}]
  %s7 = inlined_call_operand.vmem [shape: f32[32,128], index: 7, kind: output, shape index: {}]
  %s8 = sld [smem:[#allocation0]]
  $region38: #{conv_block.1} parent=0
    _
  %s10 = ssub.s32 1, %s8
  %s11 = scalar_select 0, %s10, %s8
  // Predicated region
  $region2: #{conv_block.1} parent=0 // pred_check
    _
  $region3: #{conv_block.1} parent=0 // pred_check_branch
    %13 = sbr.rel (0) target = $region5
  $region4: #{conv_block.1} parent=0 // pred_region
    _
  $region5: #{conv_block.1} parent=0 // pred_fallthru
    _
  // Predicated region
  $region6: #{conv_block.1} parent=0 // pred_check
    _
  $region7: #{conv_block.1} parent=0 // pred_check_branch
    %15 = sbr.rel (0) target = $region9
  $region8: #{conv_block.1} parent=0 // pred_region
    _
  $region9: #{conv_block.1} parent=0 // pred_fallthru
    _
  // Predicated region
  $region10: #{conv_block.1} parent=0 // pred_check
    _
  $region11: #{conv_block.1} parent=0 // pred_check_branch
    %17 = sbr.rel (0) target = $region13
  $region12: #{conv_block.1} parent=0 // pred_region
    _
  $region13: #{conv_block.1} parent=0 // pred_fallthru
    _
  // Predicated region
  $region14: #{conv_block.1} parent=0 // pred_check
    _
  $region15: #{conv_block.1} parent=0 // pred_check_branch
    %19 = sbr.rel (0) target = $region17
  $region16: #{conv_block.1} parent=0 // pred_region
    _
  $region17: #{conv_block.1} parent=0 // pred_fallthru
    _
  // Predicated region
  $region18: #{conv_block.1} parent=0 // pred_check
    _
  $region19: #{conv_block.1} parent=0 // pred_check_branch
    %21 = sbr.rel (0) target = $region21
  $region20: #{conv_block.1} parent=0 // pred_region
    _
  $region21: #{conv_block.1} parent=0 // pred_fallthru
    _
  // Predicated region
  $region22: #{conv_block.1} parent=0 // pred_check
    _
  $region23: #{conv_block.1} parent=0 // pred_check_branch
    %23 = sbr.rel (0) target = $region25
  $region24: #{conv_block.1} parent=0 // pred_region
    _
  $region25: #{conv_block.1} parent=0 // pred_fallthru
    _
  // Predicated region
  $region26: #{conv_block.1} parent=0 // pred_check
    _
  $region27: #{conv_block.1} parent=0 // pred_check_branch
    %25 = sbr.rel (0) target = $region29
  $region28: #{conv_block.1} parent=0 // pred_region
    _
  $region29: #{conv_block.1} parent=0 // pred_fallthru
    _
  %v26 = vld [vmem:[%s0] sm:$0xff]
  %v27 = vld [vmem:[%s0 + $0x8] sm:$0xff]
  %v28 = vld [vmem:[%s0 + $0x10] sm:$0xff]
  %v29 = vld [vmem:[%s0 + $0x18] sm:$0xff]
  %v30 = vld [vmem:[%s0 + $0x20] sm:$0xff]
  %v31 = vld [vmem:[%s0 + $0x28] sm:$0xff]
  %v32 = vld [vmem:[%s0 + $0x30] sm:$0xff]
  %v33 = vld [vmem:[%s0 + $0x38] sm:$0xff]
  %v34 = vld [vmem:[%s0 + $0x40] sm:$0xff]
  %v35 = vld [vmem:[%s0 + $0x48] sm:$0xff]
  %v36 = vld [vmem:[%s0 + $0x50] sm:$0xff]
  %v37 = vld [vmem:[%s0 + $0x58] sm:$0xff]
  %v38 = vld [vmem:[%s0 + $0x60] sm:$0xff]
  %v39 = vld [vmem:[%s0 + $0x68] sm:$0xff]
  %v40 = vld [vmem:[%s0 + $0x70] sm:$0xff]
  %v41 = vld [vmem:[%s0 + $0x78] sm:$0xff]
  %vm42 = vcmask 130048
  %43 = vst.msk [vmem:[#allocation2] sm:$0xff] %vm42, %v26
  %44 = vst.msk [vmem:[#allocation2 + $0x8] sm:$0xff] %vm42, %v27
  %45 = vst.msk [vmem:[#allocation2 + $0x10] sm:$0xff] %vm42, %v34
  %46 = vst.msk [vmem:[#allocation2 + $0x18] sm:$0xff] %vm42, %v35
  %51 = vrot.lane.b32.xlu0 %v28, 16
  %v52 = vpop.permute.xlu0 %51
  %53 = vrot.lane.b32.xlu0 %v29, 16
  %v54 = vpop.permute.xlu0 %53
  %55 = vrot.lane.b32.xlu0 %v36, 16
  %v56 = vpop.permute.xlu0 %55
  %57 = vrot.lane.b32.xlu0 %v37, 16
  %v58 = vpop.permute.xlu0 %57
  %vm63 = vcmask 261248
  %64 = vst.msk [vmem:[#allocation2] sm:$0xff] %vm63, %v52
  %65 = vst.msk [vmem:[#allocation2 + $0x8] sm:$0xff] %vm63, %v54
  %66 = vst.msk [vmem:[#allocation2 + $0x10] sm:$0xff] %vm63, %v56
  %67 = vst.msk [vmem:[#allocation2 + $0x18] sm:$0xff] %vm63, %v58
  %72 = vrot.lane.b32.xlu0 %v30, 32
  %v73 = vpop.permute.xlu0 %72
  %74 = vrot.lane.b32.xlu0 %v31, 32
  %v75 = vpop.permute.xlu0 %74
  %76 = vrot.lane.b32.xlu0 %v38, 32
  %v77 = vpop.permute.xlu0 %76
  %78 = vrot.lane.b32.xlu0 %v39, 32
  %v79 = vpop.permute.xlu0 %78
  %vm84 = vcmask 392448
  %85 = vst.msk [vmem:[#allocation2] sm:$0xff] %vm84, %v73
  %86 = vst.msk [vmem:[#allocation2 + $0x8] sm:$0xff] %vm84, %v75
  %87 = vst.msk [vmem:[#allocation2 + $0x10] sm:$0xff] %vm84, %v77
  %88 = vst.msk [vmem:[#allocation2 + $0x18] sm:$0xff] %vm84, %v79
  %93 = vrot.lane.b32.xlu0 %v32, 48
  %v94 = vpop.permute.xlu0 %93
  %95 = vrot.lane.b32.xlu0 %v33, 48
  %v96 = vpop.permute.xlu0 %95
  %97 = vrot.lane.b32.xlu0 %v40, 48
  %v98 = vpop.permute.xlu0 %97
  %99 = vrot.lane.b32.xlu0 %v41, 48
  %v100 = vpop.permute.xlu0 %99
  %vm105 = vcmask 523648
  %106 = vst.msk [vmem:[#allocation2] sm:$0xff] %vm105, %v94
  %107 = vst.msk [vmem:[#allocation2 + $0x8] sm:$0xff] %vm105, %v96
  %108 = vst.msk [vmem:[#allocation2 + $0x10] sm:$0xff] %vm105, %v98
  %109 = vst.msk [vmem:[#allocation2 + $0x18] sm:$0xff] %vm105, %v100
  %v110 = vld [vmem:[#allocation2] sm:$0xff]
  %v111 = vld [vmem:[#allocation2 + $0x8] sm:$0xff]
  %v112 = vld [vmem:[#allocation2 + $0x10] sm:$0xff]
  %v113 = vld [vmem:[#allocation2 + $0x18] sm:$0xff]
  %v114 = vld [vmem:[%s1] sm:$0xff]
  %v115 = vld [vmem:[%s1 + $0x8] sm:$0xff]
  %v116 = vld [vmem:[%s1 + $0x10] sm:$0xff]
  %v117 = vld [vmem:[%s1 + $0x18] sm:$0xff]
  %v118 = vld [vmem:[%s1 + $0x20] sm:$0xff]
  %v119 = vld [vmem:[%s1 + $0x28] sm:$0xff]
  %v120 = vld [vmem:[%s1 + $0x30] sm:$0xff]
  %v121 = vld [vmem:[%s1 + $0x38] sm:$0xff]
  %v122 = vld [vmem:[%s1 + $0x40] sm:$0xff]
  %v123 = vld [vmem:[%s1 + $0x48] sm:$0xff]
  %v124 = vld [vmem:[%s1 + $0x50] sm:$0xff]
  %v125 = vld [vmem:[%s1 + $0x58] sm:$0xff]
  %v126 = vld [vmem:[%s1 + $0x60] sm:$0xff]
  %v127 = vld [vmem:[%s1 + $0x68] sm:$0xff]
  %v128 = vld [vmem:[%s1 + $0x70] sm:$0xff]
  %v129 = vld [vmem:[%s1 + $0x78] sm:$0xff]
  %v130 = vld [vmem:[%s1 + $0x80] sm:$0xff]
  %v131 = vld [vmem:[%s1 + $0x88] sm:$0xff]
  %v132 = vld [vmem:[%s1 + $0x90] sm:$0xff]
  %v133 = vld [vmem:[%s1 + $0x98] sm:$0xff]
  %v134 = vld [vmem:[%s1 + $0xa0] sm:$0xff]
  %v135 = vld [vmem:[%s1 + $0xa8] sm:$0xff]
  %v136 = vld [vmem:[%s1 + $0xb0] sm:$0xff]
  %v137 = vld [vmem:[%s1 + $0xb8] sm:$0xff]
  %vm138 = vcmask 523264
  %v140 = vsel %vm138, %v110, 0
  %v143 = vsel %vm138, %v111, 0
  %v146 = vsel %vm138, %v112, 0
  %v149 = vsel %vm138, %v113, 0
  %151 = vmatprep.subr.mxu0 0.0
  %152 = vmatpush1.msra.mxu0 0.0
  %153 = vmatprep.subr.mxu0 0.0
  %154 = vmatpush1.msra.mxu0 0.0
  %155 = vmatprep.subr.mxu0 0.0
  %156 = vmatpush1.msra.mxu0 0.0
  %157 = vmatprep.subr.mxu0 0.0
  %158 = vmatpush1.msra.mxu0 0.0
  %159 = vmatprep.subr.mxu0 0.0
  %160 = vmatpush1.msra.mxu0 0.0
  %161 = vmatprep.subr.mxu0 0.0
  %162 = vmatpush1.msra.mxu0 0.0
  %163 = vmatprep.subr.mxu0 0.0
  %164 = vmatpush1.msra.mxu0 0.0
  %165 = vmatprep.subr.mxu0 0.0
  %166 = vmatpush1.msra.mxu0 0.0
  %167 = vmatprep.subr.mxu0 %v136
  %168 = vmatpush1.msra.mxu0 %v135
  %169 = vmatprep.subr.mxu0 %v133
  %170 = vmatpush1.msra.mxu0 %v132
  %171 = vmatprep.subr.mxu0 %v130
  %172 = vmatpush1.msra.mxu0 %v129
  %173 = vmatprep.subr.mxu0 %v127
  %174 = vmatpush1.msra.mxu0 %v126
  %175 = vmatprep.subr.mxu0 %v124
  %176 = vmatpush1.msra.mxu0 %v123
  %177 = vmatprep.subr.mxu0 %v121
  %178 = vmatpush1.msra.mxu0 %v120
  %179 = vmatprep.subr.mxu0 %v118
  %180 = vmatpush1.msra.mxu0 %v117
  %181 = vmatprep.subr.mxu0 %v115
  %182 = vmatpush1.msra.mxu0 %v114
  %183 = vmatprep.subr.mxu0 0.0
  %184 = vmatpush2.msra.mxu0 0.0
  %185 = vmatprep.subr.mxu0 0.0
  %186 = vmatpush2.msra.mxu0 0.0
  %187 = vmatprep.subr.mxu0 0.0
  %188 = vmatpush2.msra.mxu0 0.0
  %189 = vmatprep.subr.mxu0 0.0
  %190 = vmatpush2.msra.mxu0 0.0
  %191 = vmatprep.subr.mxu0 0.0
  %192 = vmatpush2.msra.mxu0 0.0
  %193 = vmatprep.subr.mxu0 0.0
  %194 = vmatpush2.msra.mxu0 0.0
  %195 = vmatprep.subr.mxu0 0.0
  %196 = vmatpush2.msra.mxu0 0.0
  %197 = vmatprep.subr.mxu0 0.0
  %198 = vmatpush2.msra.mxu0 0.0
  %199 = vmatprep.subr.mxu0 0.0
  %200 = vmatpush2.msra.mxu0 0.0
  %201 = vmatprep.subr.mxu0 0.0
  %202 = vmatpush2.msra.mxu0 0.0
  %203 = vmatprep.subr.mxu0 0.0
  %204 = vmatpush2.msra.mxu0 0.0
  %205 = vmatprep.subr.mxu0 0.0
  %206 = vmatpush2.msra.mxu0 0.0
  %207 = vmatprep.subr.mxu0 0.0
  %208 = vmatpush2.msra.mxu0 0.0
  %209 = vmatprep.subr.mxu0 0.0
  %210 = vmatpush2.msra.mxu0 0.0
  %211 = vmatprep.subr.mxu0 0.0
  %212 = vmatpush2.msra.mxu0 0.0
  %213 = vmatprep.subr.mxu0 0.0
  %214 = vmatpush2.msra.mxu0 0.0
  %215 = vmatprep.mubr.f32.mxu0 0.0
  %216 = vmatmul.mubr.f32.gmra.mxu0 %v140
  %v217 = vpop.f32.mrf.mxu0
  %v218 = vadd.f32 0.0, %v217
  %v219 = vpop.f32.mrf.mxu0
  %v220 = vadd.f32 0.0, %v219
  %221 = vmatprep.mubr.f32.mxu0 0.0
  %222 = vmatmul.mubr.f32.gmra.mxu0 %v143
  %v223 = vpop.f32.mrf.mxu0
  %v224 = vadd.f32 0.0, %v223
  %v225 = vpop.f32.mrf.mxu0
  %v226 = vadd.f32 0.0, %v225
  %227 = vmatprep.mubr.f32.mxu0 0.0
  %228 = vmatmul.mubr.f32.gmra.mxu0 %v146
  %v229 = vpop.f32.mrf.mxu0
  %v230 = vadd.f32 0.0, %v229
  %v231 = vpop.f32.mrf.mxu0
  %v232 = vadd.f32 0.0, %v231
  %233 = vmatprep.mubr.f32.mxu0 0.0
  %234 = vmatmul.mubr.f32.gmra.mxu0 %v149
  %v235 = vpop.f32.mrf.mxu0
  %v236 = vadd.f32 0.0, %v235
  %v237 = vpop.f32.mrf.mxu0
  %v238 = vadd.f32 0.0, %v237
  %239 = vdwg.mxu0
  %240 = vmatprep.subr.mxu0 0.0
  %241 = vmatpush1.msra.mxu0 0.0
  %242 = vmatprep.subr.mxu0 0.0
  %243 = vmatpush1.msra.mxu0 0.0
  %244 = vmatprep.subr.mxu0 0.0
  %245 = vmatpush1.msra.mxu0 0.0
  %246 = vmatprep.subr.mxu0 0.0
  %247 = vmatpush1.msra.mxu0 0.0
  %248 = vmatprep.subr.mxu0 0.0
  %249 = vmatpush1.msra.mxu0 0.0
  %250 = vmatprep.subr.mxu0 0.0
  %251 = vmatpush1.msra.mxu0 0.0
  %252 = vmatprep.subr.mxu0 0.0
  %253 = vmatpush1.msra.mxu0 0.0
  %254 = vmatprep.subr.mxu0 0.0
  %255 = vmatpush1.msra.mxu0 0.0
  %256 = vmatprep.subr.mxu0 0.0
  %257 = vmatpush1.msra.mxu0 %v137
  %258 = vmatprep.subr.mxu0 0.0
  %259 = vmatpush1.msra.mxu0 %v134
  %260 = vmatprep.subr.mxu0 0.0
  %261 = vmatpush1.msra.mxu0 %v131
  %262 = vmatprep.subr.mxu0 0.0
  %263 = vmatpush1.msra.mxu0 %v128
  %264 = vmatprep.subr.mxu0 0.0
  %265 = vmatpush1.msra.mxu0 %v125
  %266 = vmatprep.subr.mxu0 0.0
  %267 = vmatpush1.msra.mxu0 %v122
  %268 = vmatprep.subr.mxu0 0.0
  %269 = vmatpush1.msra.mxu0 %v119
  %270 = vmatprep.subr.mxu0 0.0
  %271 = vmatpush1.msra.mxu0 %v116
  %272 = vmatprep.subr.mxu0 0.0
  %273 = vmatpush2.msra.mxu0 0.0
  %274 = vmatprep.subr.mxu0 0.0
  %275 = vmatpush2.msra.mxu0 0.0
  %276 = vmatprep.subr.mxu0 0.0
  %277 = vmatpush2.msra.mxu0 0.0
  %278 = vmatprep.subr.mxu0 0.0
  %279 = vmatpush2.msra.mxu0 0.0
  %280 = vmatprep.subr.mxu0 0.0
  %281 = vmatpush2.msra.mxu0 0.0
  %282 = vmatprep.subr.mxu0 0.0
  %283 = vmatpush2.msra.mxu0 0.0
  %284 = vmatprep.subr.mxu0 0.0
  %285 = vmatpush2.msra.mxu0 0.0
  %286 = vmatprep.subr.mxu0 0.0
  %287 = vmatpush2.msra.mxu0 0.0
  %288 = vmatprep.subr.mxu0 0.0
  %289 = vmatpush2.msra.mxu0 0.0
  %290 = vmatprep.subr.mxu0 0.0
  %291 = vmatpush2.msra.mxu0 0.0
  %292 = vmatprep.subr.mxu0 0.0
  %293 = vmatpush2.msra.mxu0 0.0
  %294 = vmatprep.subr.mxu0 0.0
  %295 = vmatpush2.msra.mxu0 0.0
  %296 = vmatprep.subr.mxu0 0.0
  %297 = vmatpush2.msra.mxu0 0.0
  %298 = vmatprep.subr.mxu0 0.0
  %299 = vmatpush2.msra.mxu0 0.0
  %300 = vmatprep.subr.mxu0 0.0
  %301 = vmatpush2.msra.mxu0 0.0
  %302 = vmatprep.subr.mxu0 0.0
  %303 = vmatpush2.msra.mxu0 0.0
  %304 = vmatprep.mubr.f32.mxu0 0.0
  %305 = vmatmul.mubr.f32.gmra.mxu0 %v140
  %v306 = vpop.f32.mrf.mxu0
  %v307 = vadd.f32 0.0, %v306
  %v308 = vpop.f32.mrf.mxu0
  %309 = vmatprep.mubr.f32.mxu0 0.0
  %310 = vmatmul.mubr.f32.gmra.mxu0 %v143
  %v311 = vpop.f32.mrf.mxu0
  %v312 = vadd.f32 0.0, %v311
  %v313 = vpop.f32.mrf.mxu0
  %314 = vmatprep.mubr.f32.mxu0 0.0
  %315 = vmatmul.mubr.f32.gmra.mxu0 %v146
  %v316 = vpop.f32.mrf.mxu0
  %v317 = vadd.f32 0.0, %v316
  %v318 = vpop.f32.mrf.mxu0
  %319 = vmatprep.mubr.f32.mxu0 0.0
  %320 = vmatmul.mubr.f32.gmra.mxu0 %v149
  %v321 = vpop.f32.mrf.mxu0
  %v322 = vadd.f32 0.0, %v321
  %v323 = vpop.f32.mrf.mxu0
  %324 = vdwg.mxu0
  %v325 = vld [vmem:[%s5] sm:$0xff]
  %v326 = vld [vmem:[%s5 + $0x8] sm:$0xff]
  %v327 = vld [vmem:[%s5 + $0x10] sm:$0xff]
  %v328 = vld [vmem:[%s5 + $0x18] sm:$0xff]
  %v329 = vrot.slane %v218, 7
  %v330 = vrot.slane %v224, 7
  %v331 = vrot.slane %v230, 7
  %v332 = vrot.slane %v236, 7
  %v333 = vlaneseq
  %v334 = vshrl.u32 %v333, 7
  %vm335 = vcmp.lt.s32.totalorder %v334, 1
  %v336 = vsel %vm335, %v331, %v332
  %v337 = vsel %vm335, %v330, %v331
  %v338 = vsel %vm335, %v329, %v330
  %v339 = vsel %vm335, %v332, %v329
  %341 = vset.pattern.permute.xlu0 0
  %342 = vperm.xlu0 %341, %v325
  %v343 = vpop.permute.xlu0 %342
  %346 = vset.pattern.permute.xlu0 0
  %347 = vperm.xlu0 %346, %v326
  %v348 = vpop.permute.xlu0 %347
  %351 = vset.pattern.permute.xlu0 0
  %352 = vperm.xlu0 %351, %v327
  %v353 = vpop.permute.xlu0 %352
  %356 = vset.pattern.permute.xlu0 0
  %357 = vperm.xlu0 %356, %v328
  %v358 = vpop.permute.xlu0 %357
  %v360 = vmul.f32 %v343, %v339
  %v361 = vmul.f32 %v348, %v338
  %v362 = vmul.f32 %v353, %v337
  %v363 = vmul.f32 %v358, %v336
  %v364 = vadd.f32 %v220, %v360
  %v365 = vadd.f32 %v226, %v361
  %v366 = vadd.f32 %v232, %v362
  %v367 = vadd.f32 %v238, %v363
  %v368 = vld [vmem:[%s6] sm:$0xff]
  %v369 = vld [vmem:[%s6 + $0x8] sm:$0xff]
  %v370 = vld [vmem:[%s6 + $0x10] sm:$0xff]
  %v371 = vld [vmem:[%s6 + $0x18] sm:$0xff]
  %v372 = vrot.slane %v307, 1
  %v373 = vrot.slane %v312, 1
  %v374 = vrot.slane %v317, 1
  %v375 = vrot.slane %v322, 1
  %vm376 = vcmp.lt.s32.totalorder %v334, 7
  %v377 = vsel %vm376, %v374, %v375
  %v378 = vsel %vm376, %v373, %v374
  %v379 = vsel %vm376, %v372, %v373
  %v380 = vsel %vm376, %v375, %v372
  %382 = vset.pattern.permute.xlu0 0
  %383 = vperm.xlu0 %382, %v368
  %v384 = vpop.permute.xlu0 %383
  %387 = vset.pattern.permute.xlu0 0
  %388 = vperm.xlu0 %387, %v369
  %v389 = vpop.permute.xlu0 %388
  %392 = vset.pattern.permute.xlu0 0
  %393 = vperm.xlu0 %392, %v370
  %v394 = vpop.permute.xlu0 %393
  %397 = vset.pattern.permute.xlu0 0
  %398 = vperm.xlu0 %397, %v371
  %v399 = vpop.permute.xlu0 %398
  %v401 = vmul.f32 %v384, %v379
  %v402 = vmul.f32 %v389, %v378
  %v403 = vmul.f32 %v394, %v377
  %v404 = vmul.f32 %v399, %v380
  %v405 = vadd.f32 %v364, %v401
  %v406 = vadd.f32 %v365, %v402
  %v407 = vadd.f32 %v366, %v403
  %v408 = vadd.f32 %v367, %v404
  %vm409 = vcmask 261120
  %v411 = vsel %vm409, 1.0, 0
  %413 = vmatprep.subr.mxu0 0.0
  %414 = vmatpush1.msra.mxu0 0.0
  %415 = vmatprep.subr.mxu0 0.0
  %416 = vmatpush1.msra.mxu0 0.0
  %417 = vmatprep.subr.mxu0 0.0
  %418 = vmatpush1.msra.mxu0 0.0
  %419 = vmatprep.subr.mxu0 0.0
  %420 = vmatpush1.msra.mxu0 0.0
  %421 = vmatprep.subr.mxu0 0.0
  %422 = vmatpush1.msra.mxu0 0.0
  %423 = vmatprep.subr.mxu0 0.0
  %424 = vmatpush1.msra.mxu0 0.0
  %425 = vmatprep.subr.mxu0 0.0
  %426 = vmatpush1.msra.mxu0 0.0
  %427 = vmatprep.subr.mxu0 0.0
  %428 = vmatpush1.msra.mxu0 0.0
  %429 = vmatprep.subr.mxu0 0.0
  %430 = vmatpush1.msra.mxu0 0.0
  %431 = vmatprep.subr.mxu0 0.0
  %432 = vmatpush1.msra.mxu0 0.0
  %433 = vmatprep.subr.mxu0 0.0
  %434 = vmatpush1.msra.mxu0 0.0
  %435 = vmatprep.subr.mxu0 0.0
  %436 = vmatpush1.msra.mxu0 0.0
  %437 = vmatprep.subr.mxu0 0.0
  %438 = vmatpush1.msra.mxu0 %v408
  %439 = vmatprep.subr.mxu0 0.0
  %440 = vmatpush1.msra.mxu0 %v407
  %441 = vmatprep.subr.mxu0 0.0
  %442 = vmatpush1.msra.mxu0 %v406
  %443 = vmatprep.subr.mxu0 0.0
  %444 = vmatpush1.msra.mxu0 %v405
  %445 = vmatprep.subr.mxu0 0.0
  %446 = vmatpush2.msra.mxu0 0.0
  %447 = vmatprep.subr.mxu0 0.0
  %448 = vmatpush2.msra.mxu0 0.0
  %449 = vmatprep.subr.mxu0 0.0
  %450 = vmatpush2.msra.mxu0 0.0
  %451 = vmatprep.subr.mxu0 0.0
  %452 = vmatpush2.msra.mxu0 0.0
  %453 = vmatprep.subr.mxu0 0.0
  %454 = vmatpush2.msra.mxu0 0.0
  %455 = vmatprep.subr.mxu0 0.0
  %456 = vmatpush2.msra.mxu0 0.0
  %457 = vmatprep.subr.mxu0 0.0
  %458 = vmatpush2.msra.mxu0 0.0
  %459 = vmatprep.subr.mxu0 0.0
  %460 = vmatpush2.msra.mxu0 0.0
  %461 = vmatprep.subr.mxu0 0.0
  %462 = vmatpush2.msra.mxu0 0.0
  %463 = vmatprep.subr.mxu0 0.0
  %464 = vmatpush2.msra.mxu0 0.0
  %465 = vmatprep.subr.mxu0 0.0
  %466 = vmatpush2.msra.mxu0 0.0
  %467 = vmatprep.subr.mxu0 0.0
  %468 = vmatpush2.msra.mxu0 0.0
  %469 = vmatprep.subr.mxu0 0.0
  %470 = vmatpush2.msra.mxu0 0.0
  %471 = vmatprep.subr.mxu0 0.0
  %472 = vmatpush2.msra.mxu0 0.0
  %473 = vmatprep.subr.mxu0 0.0
  %474 = vmatpush2.msra.mxu0 0.0
  %475 = vmatprep.subr.mxu0 0.0
  %476 = vmatpush2.msra.mxu0 0.0
  %477 = vmatprep.mubr.f32.mxu0 0.0
  %478 = vmatmul.mubr.f32.gmra.mxu0 %v411
  %v479 = vpop.f32.mrf.mxu0
  %v480 = vadd.f32 0.0, %v479
  %v481 = vpop.f32.mrf.mxu0
  %482 = vdwg.mxu0
  %v483 = vld [vmem:[%s2] sm:$0xff]
  %v484 = vld [vmem:[%s2 + $0x8] sm:$0xff]
  %v485 = vld [vmem:[%s2 + $0x10] sm:$0xff]
  %v486 = vld [vmem:[%s2 + $0x18] sm:$0xff]
  %v487 = vld [vmem:[%s2 + $0x20] sm:$0xff]
  %v488 = vld [vmem:[%s2 + $0x28] sm:$0xff]
  %v489 = vld [vmem:[%s2 + $0x30] sm:$0xff]
  %v490 = vld [vmem:[%s2 + $0x38] sm:$0xff]
  %v491 = vld [vmem:[%s2 + $0x40] sm:$0xff]
  %v492 = vld [vmem:[%s2 + $0x48] sm:$0xff]
  %v493 = vld [vmem:[%s2 + $0x50] sm:$0xff]
  %v494 = vld [vmem:[%s2 + $0x58] sm:$0xff]
  %v495 = vld [vmem:[%s2 + $0x60] sm:$0xff]
  %v496 = vld [vmem:[%s2 + $0x68] sm:$0xff]
  %v497 = vld [vmem:[%s2 + $0x70] sm:$0xff]
  %v498 = vld [vmem:[%s2 + $0x78] sm:$0xff]
  %499 = vmatprep.subr.mxu0 0.0
  %500 = vmatpush1.msra.mxu0 %v498
  %501 = vmatprep.subr.mxu0 0.0
  %502 = vmatpush1.msra.mxu0 %v497
  %503 = vmatprep.subr.mxu0 0.0
  %504 = vmatpush1.msra.mxu0 %v496
  %505 = vmatprep.subr.mxu0 0.0
  %506 = vmatpush1.msra.mxu0 %v495
  %507 = vmatprep.subr.mxu0 0.0
  %508 = vmatpush1.msra.mxu0 %v494
  %509 = vmatprep.subr.mxu0 0.0
  %510 = vmatpush1.msra.mxu0 %v493
  %511 = vmatprep.subr.mxu0 0.0
  %512 = vmatpush1.msra.mxu0 %v492
  %513 = vmatprep.subr.mxu0 0.0
  %514 = vmatpush1.msra.mxu0 %v491
  %515 = vmatprep.subr.mxu0 0.0
  %516 = vmatpush1.msra.mxu0 %v490
  %517 = vmatprep.subr.mxu0 0.0
  %518 = vmatpush1.msra.mxu0 %v489
  %519 = vmatprep.subr.mxu0 0.0
  %520 = vmatpush1.msra.mxu0 %v488
  %521 = vmatprep.subr.mxu0 0.0
  %522 = vmatpush1.msra.mxu0 %v487
  %523 = vmatprep.subr.mxu0 0.0
  %524 = vmatpush1.msra.mxu0 %v486
  %525 = vmatprep.subr.mxu0 0.0
  %526 = vmatpush1.msra.mxu0 %v485
  %527 = vmatprep.subr.mxu0 0.0
  %528 = vmatpush1.msra.mxu0 %v484
  %529 = vmatprep.subr.mxu0 0.0
  %530 = vmatpush1.msra.mxu0 %v483
  %531 = vmatprep.subr.mxu0 0.0
  %532 = vmatpush2.msra.mxu0 0.0
  %533 = vmatprep.subr.mxu0 0.0
  %534 = vmatpush2.msra.mxu0 0.0
  %535 = vmatprep.subr.mxu0 0.0
  %536 = vmatpush2.msra.mxu0 0.0
  %537 = vmatprep.subr.mxu0 0.0
  %538 = vmatpush2.msra.mxu0 0.0
  %539 = vmatprep.subr.mxu0 0.0
  %540 = vmatpush2.msra.mxu0 0.0
  %541 = vmatprep.subr.mxu0 0.0
  %542 = vmatpush2.msra.mxu0 0.0
  %543 = vmatprep.subr.mxu0 0.0
  %544 = vmatpush2.msra.mxu0 0.0
  %545 = vmatprep.subr.mxu0 0.0
  %546 = vmatpush2.msra.mxu0 0.0
  %547 = vmatprep.subr.mxu0 0.0
  %548 = vmatpush2.msra.mxu0 0.0
  %549 = vmatprep.subr.mxu0 0.0
  %550 = vmatpush2.msra.mxu0 0.0
  %551 = vmatprep.subr.mxu0 0.0
  %552 = vmatpush2.msra.mxu0 0.0
  %553 = vmatprep.subr.mxu0 0.0
  %554 = vmatpush2.msra.mxu0 0.0
  %555 = vmatprep.subr.mxu0 0.0
  %556 = vmatpush2.msra.mxu0 0.0
  %557 = vmatprep.subr.mxu0 0.0
  %558 = vmatpush2.msra.mxu0 0.0
  %559 = vmatprep.subr.mxu0 0.0
  %560 = vmatpush2.msra.mxu0 0.0
  %561 = vmatprep.subr.mxu0 0.0
  %562 = vmatpush2.msra.mxu0 0.0
  %563 = vmatprep.mubr.f32.mxu0 0.0
  %564 = vmatmul.mubr.f32.gmra.mxu0 %v480
  %v565 = vpop.f32.mrf.mxu0
  %v566 = vadd.f32 0.0, %v565
  %v567 = vpop.f32.mrf.mxu0
  %568 = vdwg.mxu0
  %v569 = vlaneseq
  %v570 = vshrl.u32 %v569, 7
  %v571 = vsub.s32 0, %v570
  %v572 = vrot.slane %v566, %v571
  %v573 = vsub.f32 %v405, %v572
  %v574 = vsub.f32 %v406, %v572
  %v575 = vsub.f32 %v407, %v572
  %v576 = vsub.f32 %v408, %v572
  %v577 = vmul.f32 %v573, %v573
  %v578 = vmul.f32 %v574, %v574
  %v579 = vmul.f32 %v575, %v575
  %v580 = vmul.f32 %v576, %v576
  %581 = vmatprep.subr.mxu0 0.0
  %582 = vmatpush1.msra.mxu0 0.0
  %583 = vmatprep.subr.mxu0 0.0
  %584 = vmatpush1.msra.mxu0 0.0
  %585 = vmatprep.subr.mxu0 0.0
  %586 = vmatpush1.msra.mxu0 0.0
  %587 = vmatprep.subr.mxu0 0.0
  %588 = vmatpush1.msra.mxu0 0.0
  %589 = vmatprep.subr.mxu0 0.0
  %590 = vmatpush1.msra.mxu0 0.0
  %591 = vmatprep.subr.mxu0 0.0
  %592 = vmatpush1.msra.mxu0 0.0
  %593 = vmatprep.subr.mxu0 0.0
  %594 = vmatpush1.msra.mxu0 0.0
  %595 = vmatprep.subr.mxu0 0.0
  %596 = vmatpush1.msra.mxu0 0.0
  %597 = vmatprep.subr.mxu0 0.0
  %598 = vmatpush1.msra.mxu0 0.0
  %599 = vmatprep.subr.mxu0 0.0
  %600 = vmatpush1.msra.mxu0 0.0
  %601 = vmatprep.subr.mxu0 0.0
  %602 = vmatpush1.msra.mxu0 0.0
  %603 = vmatprep.subr.mxu0 0.0
  %604 = vmatpush1.msra.mxu0 0.0
  %605 = vmatprep.subr.mxu0 0.0
  %606 = vmatpush1.msra.mxu0 %v580
  %607 = vmatprep.subr.mxu0 0.0
  %608 = vmatpush1.msra.mxu0 %v579
  %609 = vmatprep.subr.mxu0 0.0
  %610 = vmatpush1.msra.mxu0 %v578
  %611 = vmatprep.subr.mxu0 0.0
  %612 = vmatpush1.msra.mxu0 %v577
  %613 = vmatprep.subr.mxu0 0.0
  %614 = vmatpush2.msra.mxu0 0.0
  %615 = vmatprep.subr.mxu0 0.0
  %616 = vmatpush2.msra.mxu0 0.0
  %617 = vmatprep.subr.mxu0 0.0
  %618 = vmatpush2.msra.mxu0 0.0
  %619 = vmatprep.subr.mxu0 0.0
  %620 = vmatpush2.msra.mxu0 0.0
  %621 = vmatprep.subr.mxu0 0.0
  %622 = vmatpush2.msra.mxu0 0.0
  %623 = vmatprep.subr.mxu0 0.0
  %624 = vmatpush2.msra.mxu0 0.0
  %625 = vmatprep.subr.mxu0 0.0
  %626 = vmatpush2.msra.mxu0 0.0
  %627 = vmatprep.subr.mxu0 0.0
  %628 = vmatpush2.msra.mxu0 0.0
  %629 = vmatprep.subr.mxu0 0.0
  %630 = vmatpush2.msra.mxu0 0.0
  %631 = vmatprep.subr.mxu0 0.0
  %632 = vmatpush2.msra.mxu0 0.0
  %633 = vmatprep.subr.mxu0 0.0
  %634 = vmatpush2.msra.mxu0 0.0
  %635 = vmatprep.subr.mxu0 0.0
  %636 = vmatpush2.msra.mxu0 0.0
  %637 = vmatprep.subr.mxu0 0.0
  %638 = vmatpush2.msra.mxu0 0.0
  %639 = vmatprep.subr.mxu0 0.0
  %640 = vmatpush2.msra.mxu0 0.0
  %641 = vmatprep.subr.mxu0 0.0
  %642 = vmatpush2.msra.mxu0 0.0
  %643 = vmatprep.subr.mxu0 0.0
  %644 = vmatpush2.msra.mxu0 0.0
  %645 = vmatprep.mubr.f32.mxu0 0.0
  %646 = vmatmul.mubr.f32.gmra.mxu0 %v411
  %v647 = vpop.f32.mrf.mxu0
  %v648 = vadd.f32 0.0, %v647
  %v649 = vpop.f32.mrf.mxu0
  %650 = vdwg.mxu0
  %651 = vmatprep.subr.mxu0 0.0
  %652 = vmatpush1.msra.mxu0 %v498
  %653 = vmatprep.subr.mxu0 0.0
  %654 = vmatpush1.msra.mxu0 %v497
  %655 = vmatprep.subr.mxu0 0.0
  %656 = vmatpush1.msra.mxu0 %v496
  %657 = vmatprep.subr.mxu0 0.0
  %658 = vmatpush1.msra.mxu0 %v495
  %659 = vmatprep.subr.mxu0 0.0
  %660 = vmatpush1.msra.mxu0 %v494
  %661 = vmatprep.subr.mxu0 0.0
  %662 = vmatpush1.msra.mxu0 %v493
  %663 = vmatprep.subr.mxu0 0.0
  %664 = vmatpush1.msra.mxu0 %v492
  %665 = vmatprep.subr.mxu0 0.0
  %666 = vmatpush1.msra.mxu0 %v491
  %667 = vmatprep.subr.mxu0 0.0
  %668 = vmatpush1.msra.mxu0 %v490
  %669 = vmatprep.subr.mxu0 0.0
  %670 = vmatpush1.msra.mxu0 %v489
  %671 = vmatprep.subr.mxu0 0.0
  %672 = vmatpush1.msra.mxu0 %v488
  %673 = vmatprep.subr.mxu0 0.0
  %674 = vmatpush1.msra.mxu0 %v487
  %675 = vmatprep.subr.mxu0 0.0
  %676 = vmatpush1.msra.mxu0 %v486
  %677 = vmatprep.subr.mxu0 0.0
  %678 = vmatpush1.msra.mxu0 %v485
  %679 = vmatprep.subr.mxu0 0.0
  %680 = vmatpush1.msra.mxu0 %v484
  %681 = vmatprep.subr.mxu0 0.0
  %682 = vmatpush1.msra.mxu0 %v483
  %683 = vmatprep.subr.mxu0 0.0
  %684 = vmatpush2.msra.mxu0 0.0
  %685 = vmatprep.subr.mxu0 0.0
  %686 = vmatpush2.msra.mxu0 0.0
  %687 = vmatprep.subr.mxu0 0.0
  %688 = vmatpush2.msra.mxu0 0.0
  %689 = vmatprep.subr.mxu0 0.0
  %690 = vmatpush2.msra.mxu0 0.0
  %691 = vmatprep.subr.mxu0 0.0
  %692 = vmatpush2.msra.mxu0 0.0
  %693 = vmatprep.subr.mxu0 0.0
  %694 = vmatpush2.msra.mxu0 0.0
  %695 = vmatprep.subr.mxu0 0.0
  %696 = vmatpush2.msra.mxu0 0.0
  %697 = vmatprep.subr.mxu0 0.0
  %698 = vmatpush2.msra.mxu0 0.0
  %699 = vmatprep.subr.mxu0 0.0
  %700 = vmatpush2.msra.mxu0 0.0
  %701 = vmatprep.subr.mxu0 0.0
  %702 = vmatpush2.msra.mxu0 0.0
  %703 = vmatprep.subr.mxu0 0.0
  %704 = vmatpush2.msra.mxu0 0.0
  %705 = vmatprep.subr.mxu0 0.0
  %706 = vmatpush2.msra.mxu0 0.0
  %707 = vmatprep.subr.mxu0 0.0
  %708 = vmatpush2.msra.mxu0 0.0
  %709 = vmatprep.subr.mxu0 0.0
  %710 = vmatpush2.msra.mxu0 0.0
  %711 = vmatprep.subr.mxu0 0.0
  %712 = vmatpush2.msra.mxu0 0.0
  %713 = vmatprep.subr.mxu0 0.0
  %714 = vmatpush2.msra.mxu0 0.0
  %715 = vmatprep.mubr.f32.mxu0 0.0
  %716 = vmatmul.mubr.f32.gmra.mxu0 %v648
  %v717 = vpop.f32.mrf.mxu0
  %v718 = vadd.f32 1e-05, %v717
  %v719 = vpop.f32.mrf.mxu0
  %720 = vdwg.mxu0
  %v721 = vrsqrt.pop %v718
  %v722 = vld [vmem:[%s3] sm:$0x1]
  %v723 = vmul.f32 %v721, %v722
  %v724 = vlaneseq
  %v725 = vshrl.u32 %v724, 7
  %v726 = vsub.s32 0, %v725
  %v727 = vrot.slane %v723, %v726
  %v728 = vmul.f32 %v573, %v727
  %v729 = vmul.f32 %v574, %v727
  %v730 = vmul.f32 %v575, %v727
  %v731 = vmul.f32 %v576, %v727
  %v732 = vld [vmem:[%s4] sm:$0x1]
  %v734 = vlaneseq
  %v735 = vshrl.u32 %v734, 7
  %v736 = vsub.s32 0, %v735
  %v737 = vrot.slane %v732, %v736
  %v739 = vadd.f32 %v728, %v737
  %v740 = vadd.f32 %v729, %v737
  %v741 = vadd.f32 %v730, %v737
  %v742 = vadd.f32 %v731, %v737
  %v743 = vmax.f32 %v739, 0.0
  %v744 = vmax.f32 %v740, 0.0
  %v745 = vmax.f32 %v741, 0.0
  %v746 = vmax.f32 %v742, 0.0
  %747 = vst [vmem:[%s7] sm:$0xff] %v743
  %748 = vst [vmem:[%s7 + $0x8] sm:$0xff] %v744
  %749 = vst [vmem:[%s7 + $0x10] sm:$0xff] %v745
  %750 = vst [vmem:[%s7 + $0x18] sm:$0xff] %v746
  // Predicated region
  $region30: #{conv_block.1} parent=0 // pred_check
    _
  $region31: #{conv_block.1} parent=0 // pred_check_branch
    %752 = sbr.rel (0) target = $region33
  $region32: #{conv_block.1} parent=0 // pred_region
    _
  $region33: #{conv_block.1} parent=0 // pred_fallthru
    _
  // Predicated region
  $region34: #{conv_block.1} parent=0 // pred_check
    _
  $region35: #{conv_block.1} parent=0 // pred_check_branch
    %754 = sbr.rel (0) target = $region37
  $region36: #{conv_block.1} parent=0 // pred_region
    _
  $region37: #{conv_block.1} parent=0 // pred_fallthru
    _

</llo_original>
